<compile_context>
chip_gen: v6e
topology: v6e:2x2x1
jax: 0.10.0
libtpu: 0.0.40
codegen_flags: <defaults>
</compile_context>

<pallas_src>
import functools

import jax
import jax.numpy as jnp
from jax.experimental import pallas as pl
from jax.experimental.pallas import tpu as pltpu

EPS = 1e-5  # nn.BatchNorm1d default


def _cbn_kernel(x_ref, gamma_ref, beta_ref, o_ref, *, t_valid, t_pad, inv_n):
    # x_ref     : (B, F_blk, T_pad) slab for one channel block; stats over (B, T)
    #             are complete inside the block -> grid steps are independent.
    # gamma_ref : (B, F_blk, 1) f32 conditional scale (from the 1x1 conv).
    # beta_ref  : (B, F_blk, 1) f32 conditional shift.
    xf = x_ref[...].astype(jnp.float32)          # no-op for f32 inputs
    fb = xf.shape[1]

    # --- mean: batch-axis sum first (pure VPU), then one cross-lane reduce ---
    xb = jnp.sum(xf, axis=0)                                   # (Fb, T)
    mean = jnp.sum(xb, axis=1, keepdims=True) * inv_n          # (Fb, 1)

    # --- two-pass (numerically robust) biased variance -----------------------
    d = xf - mean[None, :, :]                                  # (B, Fb, T)
    if t_pad != t_valid:
        # Zero-padded lanes must not contribute to the variance (their x is 0
        # but (0 - mean)^2 is not); padded output columns are sliced off by
        # the wrapper, so zeroing d there is harmless.
        lane = jax.lax.broadcasted_iota(jnp.int32, (fb, t_pad), 1)
        d = d * (lane < t_valid).astype(jnp.float32)[None, :, :]
    db = jnp.sum(d * d, axis=0)                                # (Fb, T)
    var = jnp.sum(db, axis=1, keepdims=True) * inv_n           # (Fb, 1)
    inv_std = jax.lax.rsqrt(var + EPS)                         # (Fb, 1)

    # --- normalize + conditional affine as one FMA (scale/shift sublane-major)
    scale = gamma_ref[...] * inv_std[None, :, :]               # (B, Fb, 1)
    o_ref[...] = (d * scale + beta_ref[...]).astype(o_ref.dtype)


def _vmem_budgets():
    """(per-step block budget, vmem_limit_bytes), generation-aware."""
    cap = None
    try:
        cap = getattr(pltpu.get_tpu_info(), "vmem_capacity_bytes", None)
    except Exception:
        cap = None
    if cap is None:
        cap = 64 * 1024 * 1024               # unknown -> assume v7x-like (safe)
    if cap >= 100 * 1024 * 1024:             # v5e / v6e: 128 MiB physical VMEM
        return 32 * 1024 * 1024, 64 * 1024 * 1024
    return 20 * 1024 * 1024, 48 * 1024 * 1024  # v7x: 64 MiB physical per TC


def _choose_f_block(B, F, T_pad, dtype, budget_bytes):
    """Largest quantum-aligned divisor of F whose per-step VMEM footprint fits
    the budget, preferring >=2 grid steps (v7x megacore + DMA pipelining)."""
    itemsize = jnp.dtype(dtype).itemsize
    quantum = max(8, 32 // itemsize)         # 8 (f32) / 16 (bf16) / 32 (i8, fp8)

    def footprint(fb):
        blk = B * fb * T_pad
        # x + out blocks double-buffered, ~3 f32 temporaries, gamma/beta blocks.
        return 2 * 2 * blk * itemsize + 3 * blk * 4 + 4 * B * fb * 4

    cands = {fb for fb in range(quantum, F + 1, quantum) if F % fb == 0}
    cands.add(F)                             # full F is exempt from sublane rule
    multi = sorted((fb for fb in cands if F // fb >= 2), reverse=True)
    single = sorted((fb for fb in cands if F // fb < 2), reverse=True)
    for fb in multi + single:
        if footprint(fb) <= budget_bytes:
            return fb
    # TODO(synk): two-phase (stats pass + apply pass) grid for B*T too large to
    # fit even the smallest (B, f_block, T) slab in VMEM.
    raise ValueError(
        f"No channel block of f_dim={F} fits the {budget_bytes >> 20} MiB VMEM "
        f"budget at B={B}, T_pad={T_pad}, dtype={dtype}; needs a two-phase kernel.")


def cbatchnorm1d(x, c, w_gamma, b_gamma, w_beta, b_beta, *, f_block=None):
    """x: (B, F, T); c: (B, C); w_*: (F, C, 1) PyTorch Conv1d weights; b_*: (F,)."""
    B, F, T = x.shape
    assert c.ndim == 2 and c.shape[0] == B
    C = c.shape[1]
    assert w_gamma.shape == (F, C, 1) and w_beta.shape == (F, C, 1)

    # 1x1 Conv1d on a length-1 sequence == tiny (B,C)@(C,F) matmul + bias.
    # Hoisted to XLA (it massively under-fills the MXU in-kernel); reshaped to
    # (B, F, 1) so the kernel's scale/shift are already sublane-major.
    gamma = (jnp.einsum('bc,fc->bf', c.astype(jnp.float32),
                        w_gamma[:, :, 0].astype(jnp.float32))
             + b_gamma.astype(jnp.float32))[:, :, None]           # (B, F, 1)
    beta = (jnp.einsum('bc,fc->bf', c.astype(jnp.float32),
                       w_beta[:, :, 0].astype(jnp.float32))
            + b_beta.astype(jnp.float32))[:, :, None]             # (B, F, 1)

    # Lane-dense output guard: pad T to a multiple of 128 (masked out of stats).
    T_pad = -(-T // 128) * 128
    x_in = x if T_pad == T else jnp.pad(x, ((0, 0), (0, 0), (0, T_pad - T)))

    budget, vmem_limit = _vmem_budgets()
    if f_block is None:
        f_block = _choose_f_block(B, F, T_pad, x.dtype, budget)
    assert F % f_block == 0, "f_block must divide f_dim"
    grid = (F // f_block,)

    kernel = functools.partial(_cbn_kernel, t_valid=T, t_pad=T_pad,
                               inv_n=1.0 / float(B * T))

    out = pl.pallas_call(
        kernel,
        out_shape=jax.ShapeDtypeStruct((B, F, T_pad), x.dtype),
        grid_spec=pltpu.PrefetchScalarGridSpec(
            num_scalar_prefetch=0,
            grid=grid,
            in_specs=[
                pl.BlockSpec((B, f_block, T_pad), lambda i: (0, i, 0)),  # x slab
                pl.BlockSpec((B, f_block, 1), lambda i: (0, i, 0)),      # gamma
                pl.BlockSpec((B, f_block, 1), lambda i: (0, i, 0)),      # beta
            ],
            out_specs=pl.BlockSpec((B, f_block, T_pad), lambda i: (0, i, 0)),
        ),
        compiler_params=pltpu.CompilerParams(
            # Channel blocks are independent -> v7x's two TensorCores split them.
            dimension_semantics=("parallel",),
            vmem_limit_bytes=vmem_limit,
        ),
    )(x_in, gamma, beta)
    return out if T_pad == T else out[:, :, :T]


def cbatchnorm1d_ref(x, c, w_gamma, b_gamma, w_beta, b_beta):
    """Pure-JAX reference matching the PyTorch module semantics."""
    gamma = jnp.einsum('bc,fc->bf', c, w_gamma[:, :, 0]) + b_gamma    # (B, F)
    beta = jnp.einsum('bc,fc->bf', c, w_beta[:, :, 0]) + b_beta
    mean = jnp.mean(x, axis=(0, 2), keepdims=True)
    var = jnp.mean((x - mean) ** 2, axis=(0, 2), keepdims=True)
    net = (x - mean) / jnp.sqrt(var + EPS)
    return gamma[:, :, None] * net + beta[:, :, None]


if __name__ == "__main__":
    B, C, F, T = 4, 16, 32, 512  # batch, c_dim, f_dim, num points

    key = jax.random.PRNGKey(0)
    kx, kc, kwg, kbg, kwb, kbb = jax.random.split(key, 6)

    x = jax.random.normal(kx, (B, F, T), dtype=jnp.float32)
    c = jax.random.normal(kc, (B, C), dtype=jnp.float32)

    # Conv1d(c_dim, f_dim, 1) parameter shapes: weight (F, C, 1), bias (F,).
    # (reset_parameters() would give gamma=1, beta=0; random weights exercise
    # the conditional path.)
    w_gamma = 0.1 * jax.random.normal(kwg, (F, C, 1), dtype=jnp.float32)
    b_gamma = 1.0 + 0.05 * jax.random.normal(kbg, (F,), dtype=jnp.float32)
    w_beta = 0.1 * jax.random.normal(kwb, (F, C, 1), dtype=jnp.float32)
    b_beta = 0.05 * jax.random.normal(kbb, (F,), dtype=jnp.float32)

    ref = cbatchnorm1d_ref(x, c, w_gamma, b_gamma, w_beta, b_beta)

    # 1) auto block chooser (prefers >=2 grid steps -> both v7x cores busy).
    out = jax.block_until_ready(cbatchnorm1d(x, c, w_gamma, b_gamma, w_beta, b_beta))
    assert out.shape == (B, F, T) and out.dtype == x.dtype
    assert jnp.allclose(out, ref, atol=1e-4, rtol=1e-4), "mismatch (auto block)"

    # 2) explicit small block -> 4 grid steps.
    out2 = jax.block_until_ready(
        cbatchnorm1d(x, c, w_gamma, b_gamma, w_beta, b_beta, f_block=8))
    assert jnp.allclose(out2, ref, atol=1e-4, rtol=1e-4), "mismatch (f_block=8)"

    # 3) ragged T (not a lane multiple) -> padded + masked-stats path.
    T3 = 200
    x3 = jax.random.normal(jax.random.PRNGKey(1), (B, F, T3), dtype=jnp.float32)
    ref3 = cbatchnorm1d_ref(x3, c, w_gamma, b_gamma, w_beta, b_beta)
    out3 = jax.block_until_ready(cbatchnorm1d(x3, c, w_gamma, b_gamma, w_beta, b_beta))
    assert out3.shape == (B, F, T3)
    assert jnp.allclose(out3, ref3, atol=1e-4, rtol=1e-4), "mismatch (ragged T)"

    # 4) bf16 streaming (halves HBM traffic); stats/FMA stay in f32 in-kernel.
    x4 = x.astype(jnp.bfloat16)
    ref4 = cbatchnorm1d_ref(x4.astype(jnp.float32), c, w_gamma, b_gamma, w_beta, b_beta)
    out4 = jax.block_until_ready(cbatchnorm1d(x4, c, w_gamma, b_gamma, w_beta, b_beta))
    assert out4.dtype == jnp.bfloat16
    assert jnp.allclose(out4.astype(jnp.float32), ref4, atol=5e-2, rtol=5e-2), \
        "mismatch (bf16)"

    # TODO(synk): BatchNorm1d training-mode running_mean/running_var updates
    # (unbiased var) are module side effects not produced here; forward output
    # is unaffected. instance_norm / group_norm branches not implemented.
    print("KERNEL_OK")
</pallas_src>

<mosaic_0001>
module attributes {stable_mosaic.version = 11 : i64} {
  func.func @_cbn_kernel(%arg0: i32, %arg1: memref<4x16x512xf32, #tpu.memory_space<vmem>>, %arg2: memref<4x16x1xf32, #tpu.memory_space<vmem>>, %arg3: memref<4x16x1xf32, #tpu.memory_space<vmem>>, %arg4: memref<4x16x512xf32, #tpu.memory_space<vmem>>) attributes {dimension_semantics = [#tpu.dimension_semantics<parallel>], iteration_bounds = array<i64: 2>, scalar_prefetch = 0 : i64, scratch_operands = 0 : i64, tpu.core_type = #tpu.core_type<tc>, window_params = [{transform_indices = @transform_0, window_bounds = array<i64: 4, 16, 512>}, {transform_indices = @transform_1, window_bounds = array<i64: 4, 16, 1>}, {transform_indices = @transform_2, window_bounds = array<i64: 4, 16, 1>}, {transform_indices = @transform_3, window_bounds = array<i64: 4, 16, 512>}]} {
    %c0 = arith.constant 0 : index
    %c0_0 = arith.constant 0 : index
    %c0_1 = arith.constant 0 : index
    %0 = vector.load %arg1[%c0, %c0_0, %c0_1] : memref<4x16x512xf32, #tpu.memory_space<vmem>>, vector<4x16x512xf32>
    %cst = arith.constant dense<0.000000e+00> : vector<16x512xf32>
    %1 = vector.multi_reduction <add>, %0, %cst [0] : vector<4x16x512xf32> to vector<16x512xf32>
    %cst_2 = arith.constant dense<0.000000e+00> : vector<16xf32>
    %2 = vector.multi_reduction <add>, %1, %cst_2 [1] : vector<16x512xf32> to vector<16xf32>
    %3 = vector.shape_cast %2 : vector<16xf32> to vector<16x1xf32>
    %cst_3 = arith.constant 4.8828125E-4 : f32
    %4 = vector.broadcast %cst_3 : f32 to vector<16x1xf32>
    %5 = arith.mulf %3, %4 : vector<16x1xf32>
    %6 = vector.shape_cast %5 : vector<16x1xf32> to vector<1x16x1xf32>
    %7 = vector.broadcast %6 : vector<1x16x1xf32> to vector<4x16x512xf32>
    %8 = arith.subf %0, %7 : vector<4x16x512xf32>
    %9 = arith.mulf %8, %8 : vector<4x16x512xf32>
    %cst_4 = arith.constant dense<0.000000e+00> : vector<16x512xf32>
    %10 = vector.multi_reduction <add>, %9, %cst_4 [0] : vector<4x16x512xf32> to vector<16x512xf32>
    %cst_5 = arith.constant dense<0.000000e+00> : vector<16xf32>
    %11 = vector.multi_reduction <add>, %10, %cst_5 [1] : vector<16x512xf32> to vector<16xf32>
    %12 = vector.shape_cast %11 : vector<16xf32> to vector<16x1xf32>
    %cst_6 = arith.constant 4.8828125E-4 : f32
    %13 = vector.broadcast %cst_6 : f32 to vector<16x1xf32>
    %14 = arith.mulf %12, %13 : vector<16x1xf32>
    %cst_7 = arith.constant 9.99999974E-6 : f32
    %15 = vector.broadcast %cst_7 : f32 to vector<16x1xf32>
    %16 = arith.addf %14, %15 : vector<16x1xf32>
    %17 = math.rsqrt %16 : vector<16x1xf32>
    %c0_8 = arith.constant 0 : index
    %c0_9 = arith.constant 0 : index
    %c0_10 = arith.constant 0 : index
    %18 = vector.load %arg2[%c0_8, %c0_9, %c0_10] : memref<4x16x1xf32, #tpu.memory_space<vmem>>, vector<4x16x1xf32>
    %19 = vector.shape_cast %17 : vector<16x1xf32> to vector<1x16x1xf32>
    %20 = vector.broadcast %19 : vector<1x16x1xf32> to vector<4x16x1xf32>
    %21 = arith.mulf %18, %20 : vector<4x16x1xf32>
    %22 = vector.broadcast %21 : vector<4x16x1xf32> to vector<4x16x512xf32>
    %23 = arith.mulf %8, %22 : vector<4x16x512xf32>
    %c0_11 = arith.constant 0 : index
    %c0_12 = arith.constant 0 : index
    %c0_13 = arith.constant 0 : index
    %24 = vector.load %arg3[%c0_11, %c0_12, %c0_13] : memref<4x16x1xf32, #tpu.memory_space<vmem>>, vector<4x16x1xf32>
    %25 = vector.broadcast %24 : vector<4x16x1xf32> to vector<4x16x512xf32>
    %26 = arith.addf %23, %25 : vector<4x16x512xf32>
    %c0_14 = arith.constant 0 : index
    %c0_15 = arith.constant 0 : index
    %c0_16 = arith.constant 0 : index
    %27 = vector.load %arg4[%c0_14, %c0_15, %c0_16] : memref<4x16x512xf32, #tpu.memory_space<vmem>>, vector<4x16x512xf32>
    tpu.vector_store %arg4[%c0_14, %c0_15, %c0_16], %26 {strides = array<i32>} : memref<4x16x512xf32, #tpu.memory_space<vmem>>, vector<4x16x512xf32>,
    return
  }
  func.func @transform_0(%arg0: i32) -> (i32, i32, i32) {
    %c0_i32 = arith.constant 0 : i32
    %c0_i32_0 = arith.constant 0 : i32
    %c0_i32_1 = arith.constant 0 : i32
    return %c0_i32, %arg0, %c0_i32_0 : i32, i32, i32
  }
  func.func @transform_1(%arg0: i32) -> (i32, i32, i32) {
    %c0_i32 = arith.constant 0 : i32
    %c0_i32_0 = arith.constant 0 : i32
    %c0_i32_1 = arith.constant 0 : i32
    return %c0_i32, %arg0, %c0_i32_0 : i32, i32, i32
  }
  func.func @transform_2(%arg0: i32) -> (i32, i32, i32) {
    %c0_i32 = arith.constant 0 : i32
    %c0_i32_0 = arith.constant 0 : i32
    %c0_i32_1 = arith.constant 0 : i32
    return %c0_i32, %arg0, %c0_i32_0 : i32, i32, i32
  }
  func.func @transform_3(%arg0: i32) -> (i32, i32, i32) {
    %c0_i32 = arith.constant 0 : i32
    %c0_i32_0 = arith.constant 0 : i32
    %c0_i32_1 = arith.constant 0 : i32
    return %c0_i32, %arg0, %c0_i32_0 : i32, i32, i32
  }
}

</mosaic_0001>

<llo_original>
// kernel: tpu_custom_call.1
$region0: #{tpu_custom_call.1}
  #allocation0 [shape = 'u32[]', space=smem, size = 0x4, offset = 0x4, fixed_abs, tag = 'smem constant byte address 0x4 - core index']
  #allocation1 [shape = 'u32[144,128]{1,0:T(1,128)}', space=vmem, size = 0x12000, scoped, tag = 'internal scratch']
  #allocation8 [shape = 's32[]', space=sflag, size = 0x4, offset = 0, fixed_abs, tag = 'sflag constant byte address 0x0 - dummy sync flag']
  #allocation10 [shape = 's32[]', space=sflag, size = 0x4, offset = 0, fixed_abs, tag = 'sflag constant byte address 0x0 - dummy sync flag']
  %s0 = inlined_call_operand.hbm [shape: f32[4,32,512], index: 0, kind: input, shape index: {}]
  %s1 = inlined_call_operand.vmem [shape: f32[4,32,1], index: 1, kind: input, shape index: {}]
  %s2 = inlined_call_operand.vmem [shape: f32[4,32,1], index: 2, kind: input, shape index: {}]
  %s3 = inlined_call_operand.hbm [shape: f32[4,32,512], index: 3, kind: output, shape index: {}]
  %s4 = sld [smem:[#allocation0]]
  $region125: #{tpu_custom_call.1} parent=0
    _
  %s6 = ssub.s32 1, %s4
  %s7 = scalar_select 0, %s6, %s4
  $region1: #{tpu_custom_call.1} parent=0
    #allocation2 [shape = 'u8[262144]{0}', space=vmem, size = 0x40000, scoped, tag = 'input window, operand 0']
    #allocation3 [shape = 's32[2]{0}', space=sflag, size = 0x8, scoped, tag = 'scoped memory for tpu_custom_call.1']
    #allocation4 [shape = 's32[2]{0}', space=sflag, size = 0x8, scoped, tag = 'scoped memory for tpu_custom_call.1']
    #allocation5 [shape = 'u8[65536]{0}', space=vmem, size = 0x10000, scoped, tag = 'input window, operand 1']
    #allocation6 [shape = 'u8[65536]{0}', space=vmem, size = 0x10000, scoped, tag = 'input window, operand 2']
    #allocation7 [shape = 'u8[262144]{0}', space=vmem, size = 0x40000, scoped, tag = 'output window, operand 0']
    %8 = vsyncpa [#allocation3], 0
    %s9 = scalar_lea.sflag [#allocation3], 1
    %10 = vsyncpa %s9, 0
    %11 = vsyncpa [#allocation4], 0
    %s12 = scalar_lea.sflag [#allocation4], 1
    %13 = vsyncpa %s12, 0
    loop: start=0, step=1, limit=4
    $region2: #{tpu_custom_call.1} parent=1 // loop_pre_header
      _
    $region3: #{tpu_custom_call.1} parent=1 // loop_header
      %s15 = sphi 0, %s19
      %p16 = scmp.ge.s32.totalorder %s15, 4
      %s25 = sphi 0, %s27
      %s28 = sphi 0, %s25
      %s29 = sphi 0, %s28
      %s45 = sphi 0, %s29
      %s51 = sphi 0, %s53
      %s54 = sphi 0, %s51
      %s55 = sphi 0, %s54
      %s71 = sphi 0, %s55
      %s77 = sphi 0, %s79
      %s80 = sphi 0, %s77
      %s81 = sphi 0, %s80
      %s97 = sphi 0, %s81
      %s103 = sphi 0, %s105
      %s106 = sphi 0, %s103
      %s107 = sphi 0, %s106
      %s123 = sphi 0, %s107
    $region4: #{tpu_custom_call.1} parent=1 // loop_header_branch
      %18 = sbr.rel (%p16) target = $region8
    $region5: #{tpu_custom_call.1} parent=1 // loop_body
      %s20 = ssub.s32 %s15, 1
      %s21 = ssub.s32 %s15, 2
      %s22 = sadd.s32 %s15, 1
      %s23 = ssub.s32 %s15, %s22
      %p24 = scmp.eq.s32.totalorder %s23, 0
      %s26 = sadd.s32 %s25, 1
      %s27 = scalar_select %p24, %s25, %s26
      %p30 = pneg %p24
      %p31 = scmp.eq.s32.totalorder %s15, 1
      %p32 = por %p30, %p31
      %p33 = scmp.ne.s32.totalorder %s25, %s28
      %p34 = scmp.eq.s32.totalorder %s15, 0
      %p35 = por %p33, %p34
      %p36 = scmp.ne.s32.totalorder %s25, %s28
      %p37 = scmp.eq.s32.totalorder %s20, 1
      %p38 = por %p36, %p37
      %p39 = scmp.ne.s32.totalorder %s28, %s29
      %p40 = scmp.eq.s32.totalorder %s20, 0
      %p41 = por %p39, %p40
      %p42 = scmp.ne.s32.totalorder %s28, %s29
      %p43 = scmp.eq.s32.totalorder %s21, 1
      %p44 = por %p42, %p43
      %p46 = scmp.ne.s32.totalorder %s29, %s45
      %p47 = scmp.eq.s32.totalorder %s21, 0
      %p48 = por %p46, %p47
      %s49 = ssub.s32 %s15, %s22
      %p50 = scmp.eq.s32.totalorder %s49, 0
      %s52 = sadd.s32 %s51, 1
      %s53 = scalar_select %p50, %s51, %s52
      %p56 = pneg %p50
      %p57 = scmp.eq.s32.totalorder %s15, 1
      %p58 = por %p56, %p57
      %p59 = scmp.ne.s32.totalorder %s51, %s54
      %p60 = scmp.eq.s32.totalorder %s15, 0
      %p61 = por %p59, %p60
      %p62 = scmp.ne.s32.totalorder %s51, %s54
      %p63 = scmp.eq.s32.totalorder %s20, 1
      %p64 = por %p62, %p63
      %p65 = scmp.ne.s32.totalorder %s54, %s55
      %p66 = scmp.eq.s32.totalorder %s20, 0
      %p67 = por %p65, %p66
      %p68 = scmp.ne.s32.totalorder %s54, %s55
      %p69 = scmp.eq.s32.totalorder %s21, 1
      %p70 = por %p68, %p69
      %p72 = scmp.ne.s32.totalorder %s55, %s71
      %p73 = scmp.eq.s32.totalorder %s21, 0
      %p74 = por %p72, %p73
      %s75 = ssub.s32 %s15, %s22
      %p76 = scmp.eq.s32.totalorder %s75, 0
      %s78 = sadd.s32 %s77, 1
      %s79 = scalar_select %p76, %s77, %s78
      %p82 = pneg %p76
      %p83 = scmp.eq.s32.totalorder %s15, 1
      %p84 = por %p82, %p83
      %p85 = scmp.ne.s32.totalorder %s77, %s80
      %p86 = scmp.eq.s32.totalorder %s15, 0
      %p87 = por %p85, %p86
      %p88 = scmp.ne.s32.totalorder %s77, %s80
      %p89 = scmp.eq.s32.totalorder %s20, 1
      %p90 = por %p88, %p89
      %p91 = scmp.ne.s32.totalorder %s80, %s81
      %p92 = scmp.eq.s32.totalorder %s20, 0
      %p93 = por %p91, %p92
      %p94 = scmp.ne.s32.totalorder %s80, %s81
      %p95 = scmp.eq.s32.totalorder %s21, 1
      %p96 = por %p94, %p95
      %p98 = scmp.ne.s32.totalorder %s81, %s97
      %p99 = scmp.eq.s32.totalorder %s21, 0
      %p100 = por %p98, %p99
      %s101 = ssub.s32 %s15, %s22
      %p102 = scmp.eq.s32.totalorder %s101, 0
      %s104 = sadd.s32 %s103, 1
      %s105 = scalar_select %p102, %s103, %s104
      %p108 = pneg %p102
      %p109 = scmp.eq.s32.totalorder %s15, 1
      %p110 = por %p108, %p109
      %p111 = scmp.ne.s32.totalorder %s103, %s106
      %p112 = scmp.eq.s32.totalorder %s15, 0
      %p113 = por %p111, %p112
      %p114 = scmp.ne.s32.totalorder %s103, %s106
      %p115 = scmp.eq.s32.totalorder %s20, 1
      %p116 = por %p114, %p115
      %p117 = scmp.ne.s32.totalorder %s106, %s107
      %p118 = scmp.eq.s32.totalorder %s20, 0
      %p119 = por %p117, %p118
      %p120 = scmp.ne.s32.totalorder %s106, %s107
      %p121 = scmp.eq.s32.totalorder %s21, 1
      %p122 = por %p120, %p121
      %p124 = scmp.ne.s32.totalorder %s107, %s123
      %p125 = scmp.eq.s32.totalorder %s21, 0
      %p126 = por %p124, %p125
      %p127 = scmp.le.s32.totalorder 1, %s15
      %p128 = scmp.lt.s32.totalorder %s15, 3
      %p129 = pnand %p127, %p128
      %p130 = pneg %p129
      // Predicated region
      $region9: #{tpu_custom_call.1} parent=5 // pred_check
        _
      $region10: #{tpu_custom_call.1} parent=5 // pred_check_branch
        %132 = sbr.rel (%p129) target = $region12
      $region11: #{tpu_custom_call.1} parent=5 // pred_region
        %s133 = ssub.s32 %s15, 1
      $region12: #{tpu_custom_call.1} parent=5 // pred_fallthru
        _
      %p134 = scmp.lt.s32.totalorder %s15, 2
      // Predicated region
      $region13: #{tpu_custom_call.1} parent=5 // pred_check
        %p135 = pneg %p134
      $region14: #{tpu_custom_call.1} parent=5 // pred_check_branch
        %137 = sbr.rel (%p135) target = $region16
      $region15: #{tpu_custom_call.1} parent=5 // pred_region
        // Predicated region
        $region17: #{tpu_custom_call.1} parent=15 // pred_check
          %p138 = pneg %p35
        $region18: #{tpu_custom_call.1} parent=15 // pred_check_branch
          %140 = sbr.rel (%p138) target = $region20
        $region19: #{tpu_custom_call.1} parent=15 // pred_region
          #allocation9 [shape = 'u32[6]{0}', space=smem, size = 0x18, scoped, tag = 'DMA stride descriptor']
          %s141 = sand.u32 %s25, 1
          %s142 = scalar_lea.sflag [#allocation3], %s141
          %s143 = sand.u32 %s25, 1
          %s144 = smul.addr %s143, 256
          %s145 = scalar_lea.vmem [#allocation2], %s144
          %s146 = smul.u32 2, %s15
          %s148 = ssub.s32 4096, 4096
          %149 = vsyncadd %s142, %s148
          %s150 = smul.addr %s146, 4
          %s151 = smul.addr %s150, 128
          %s152 = scalar_lea.hbm %s0, %s151
          %s154 = sshll.u32 1, 14
          %s155 = sxor.u32 4294967295, %s154
          %s157 = sld [smem:[#allocation0]]
          %s158 = sadd.s32 2, %s157
          %s160 = sshll.u32 7, 26
          %s161 = sxor.u32 4294967295, %s160
          %s162 = sand.u32 0, %s161
          %s163 = sshll.u32 %s158, 26
          %s164 = sor.u32 %s162, %s163
          %s165 = sshll.u32 %s145, 4
          %s166 = int_to_ptr.vmem [resolvable:$true] %s165
          %172 = sst [smem:[#allocation9]] 2048
          %s173 = scalar_lea.smem [#allocation9], 1
          %174 = sst [smem:[%s173]] 1024
          %s175 = scalar_lea.smem [#allocation9], 2
          %176 = sst [smem:[%s175]] 2
          %s177 = scalar_lea.smem [#allocation9], 3
          %178 = sst [smem:[%s177]] 512
          %s179 = scalar_lea.smem [#allocation9], 4
          %180 = sst [smem:[%s179]] 512
          %s181 = scalar_lea.smem [#allocation9], 5
          %182 = sst [smem:[%s181]] 32
          %184 = dma.general %s152, 4096, %s166, %s142, 131072, [#allocation9], %s164, 0
        $region20: #{tpu_custom_call.1} parent=15 // pred_fallthru
          _
        // Predicated region
        $region21: #{tpu_custom_call.1} parent=15 // pred_check
          %p185 = pneg %p61
        $region22: #{tpu_custom_call.1} parent=15 // pred_check_branch
          %187 = sbr.rel (%p185) target = $region24
        $region23: #{tpu_custom_call.1} parent=15 // pred_region
          %s188 = sand.u32 %s51, 1
          %s189 = sand.u32 %s51, 1
          %s190 = smul.addr %s189, 64
          %s191 = scalar_lea.vmem [#allocation5], %s190
          %s192 = smul.u32 2, %s15
          %s193 = smul.addr %s192, 8
          %s194 = scalar_lea.vmem %s1, %s193
          // Predicated region
          $region25: #{tpu_custom_call.1} parent=23 // pred_check
            _
          $region26: #{tpu_custom_call.1} parent=23 // pred_check_branch
            %196 = sbr.rel (0) target = $region28
          $region27: #{tpu_custom_call.1} parent=23 // pred_region
            // Predicated region
            $region29: #{tpu_custom_call.1} parent=27 // pred_check
              _
            $region30: #{tpu_custom_call.1} parent=27 // pred_check_branch
              %198 = sbr.rel (0) target = $region32
            $region31: #{tpu_custom_call.1} parent=27 // pred_region
              // Predicated region
              $region44: #{tpu_custom_call.1} parent=31 // pred_check
                _
              $region45: #{tpu_custom_call.1} parent=31 // pred_check_branch
                %228 = sbr.rel (0) target = $region47
              $region46: #{tpu_custom_call.1} parent=31 // pred_region
                loop: start=0, step=1, limit=1
                $region48: #{tpu_custom_call.1} parent=46 // loop_pre_header
                  _
                $region49: #{tpu_custom_call.1} parent=46 // loop_header
                  %s230 = sphi 0, %s234
                  %p231 = scmp.ge.s32.totalorder %s230, 1
                  %s235 = sphi %s194, %s194
                  %s236 = sphi %s191, %s191
                $region50: #{tpu_custom_call.1} parent=46 // loop_header_branch
                  %233 = sbr.rel (%p231) target = $region54
                $region51: #{tpu_custom_call.1} parent=46 // loop_body
                  %v237 = vld [vmem:[%s235] sm:$0xff]
                  %238 = vst [vmem:[%s236] sm:$0xff] %v237
                  %v239 = vld [vmem:[%s235 + $0x8] sm:$0xff]
                  %240 = vst [vmem:[%s236 + $0x8] sm:$0xff] %v239
                  %v241 = vld [vmem:[%s235 + $0x20] sm:$0xff]
                  %242 = vst [vmem:[%s236 + $0x10] sm:$0xff] %v241
                  %v243 = vld [vmem:[%s235 + $0x28] sm:$0xff]
                  %244 = vst [vmem:[%s236 + $0x18] sm:$0xff] %v243
                  %v245 = vld [vmem:[%s235 + $0x40] sm:$0xff]
                  %246 = vst [vmem:[%s236 + $0x20] sm:$0xff] %v245
                  %v247 = vld [vmem:[%s235 + $0x48] sm:$0xff]
                  %248 = vst [vmem:[%s236 + $0x28] sm:$0xff] %v247
                  %v249 = vld [vmem:[%s235 + $0x60] sm:$0xff]
                  %250 = vst [vmem:[%s236 + $0x30] sm:$0xff] %v249
                  %v251 = vld [vmem:[%s235 + $0x68] sm:$0xff]
                  %252 = vst [vmem:[%s236 + $0x38] sm:$0xff] %v251
                $region52: #{tpu_custom_call.1} parent=46 // loop_footer
                  %s234 = sadd.s32 1, %s230
                $region53: #{tpu_custom_call.1} parent=46 // loop_footer_branch
                  %229 = sbr.rel target = $region49
                $region54: #{tpu_custom_call.1} parent=46 // loop_exit
                  _
              $region47: #{tpu_custom_call.1} parent=31 // pred_fallthru
                _
              // Predicated region
              $region55: #{tpu_custom_call.1} parent=31 // pred_check
                _
              $region56: #{tpu_custom_call.1} parent=31 // pred_check_branch
                %254 = sbr.rel target = $region58
              $region57: #{tpu_custom_call.1} parent=31 // pred_region
                _
              $region58: #{tpu_custom_call.1} parent=31 // pred_fallthru
                _
            $region32: #{tpu_custom_call.1} parent=27 // pred_fallthru
              _
            // Predicated region
            $region33: #{tpu_custom_call.1} parent=27 // pred_check
              _
            $region34: #{tpu_custom_call.1} parent=27 // pred_check_branch
              %200 = sbr.rel target = $region36
            $region35: #{tpu_custom_call.1} parent=27 // pred_region
              %s202 = ssub.s32 256, 1
              loop: start=0, step=1, limit=1
              $region37: #{tpu_custom_call.1} parent=35 // loop_pre_header
                _
              $region38: #{tpu_custom_call.1} parent=35 // loop_header
                %s204 = sphi 0, %s208
                %p205 = scmp.ge.s32.totalorder %s204, 1
                %s209 = sphi %s194, %s194
                %s210 = sphi %s191, %s191
              $region39: #{tpu_custom_call.1} parent=35 // loop_header_branch
                %207 = sbr.rel (%p205) target = $region43
              $region40: #{tpu_custom_call.1} parent=35 // loop_body
                %v211 = vld [vmem:[%s209] sm:%s202]
                %212 = vst [vmem:[%s210] sm:%s202] %v211
                %v213 = vld [vmem:[%s209 + $0x8] sm:%s202]
                %214 = vst [vmem:[%s210 + $0x8] sm:%s202] %v213
                %v215 = vld [vmem:[%s209 + $0x20] sm:%s202]
                %216 = vst [vmem:[%s210 + $0x10] sm:%s202] %v215
                %v217 = vld [vmem:[%s209 + $0x28] sm:%s202]
                %218 = vst [vmem:[%s210 + $0x18] sm:%s202] %v217
                %v219 = vld [vmem:[%s209 + $0x40] sm:%s202]
                %220 = vst [vmem:[%s210 + $0x20] sm:%s202] %v219
                %v221 = vld [vmem:[%s209 + $0x48] sm:%s202]
                %222 = vst [vmem:[%s210 + $0x28] sm:%s202] %v221
                %v223 = vld [vmem:[%s209 + $0x60] sm:%s202]
                %224 = vst [vmem:[%s210 + $0x30] sm:%s202] %v223
                %v225 = vld [vmem:[%s209 + $0x68] sm:%s202]
                %226 = vst [vmem:[%s210 + $0x38] sm:%s202] %v225
              $region41: #{tpu_custom_call.1} parent=35 // loop_footer
                %s208 = sadd.s32 1, %s204
              $region42: #{tpu_custom_call.1} parent=35 // loop_footer_branch
                %203 = sbr.rel target = $region38
              $region43: #{tpu_custom_call.1} parent=35 // loop_exit
                _
            $region36: #{tpu_custom_call.1} parent=27 // pred_fallthru
              _
          $region28: #{tpu_custom_call.1} parent=23 // pred_fallthru
            _
          %255 = vnop
        $region24: #{tpu_custom_call.1} parent=15 // pred_fallthru
          _
        // Predicated region
        $region59: #{tpu_custom_call.1} parent=15 // pred_check
          %p256 = pneg %p87
        $region60: #{tpu_custom_call.1} parent=15 // pred_check_branch
          %258 = sbr.rel (%p256) target = $region62
        $region61: #{tpu_custom_call.1} parent=15 // pred_region
          %s259 = sand.u32 %s77, 1
          %s260 = sand.u32 %s77, 1
          %s261 = smul.addr %s260, 64
          %s262 = scalar_lea.vmem [#allocation6], %s261
          %s263 = smul.u32 2, %s15
          %s264 = smul.addr %s263, 8
          %s265 = scalar_lea.vmem %s2, %s264
          // Predicated region
          $region63: #{tpu_custom_call.1} parent=61 // pred_check
            _
          $region64: #{tpu_custom_call.1} parent=61 // pred_check_branch
            %267 = sbr.rel (0) target = $region66
          $region65: #{tpu_custom_call.1} parent=61 // pred_region
            // Predicated region
            $region67: #{tpu_custom_call.1} parent=65 // pred_check
              _
            $region68: #{tpu_custom_call.1} parent=65 // pred_check_branch
              %269 = sbr.rel (0) target = $region70
            $region69: #{tpu_custom_call.1} parent=65 // pred_region
              // Predicated region
              $region82: #{tpu_custom_call.1} parent=69 // pred_check
                _
              $region83: #{tpu_custom_call.1} parent=69 // pred_check_branch
                %299 = sbr.rel (0) target = $region85
              $region84: #{tpu_custom_call.1} parent=69 // pred_region
                loop: start=0, step=1, limit=1
                $region86: #{tpu_custom_call.1} parent=84 // loop_pre_header
                  _
                $region87: #{tpu_custom_call.1} parent=84 // loop_header
                  %s301 = sphi 0, %s305
                  %p302 = scmp.ge.s32.totalorder %s301, 1
                  %s306 = sphi %s265, %s265
                  %s307 = sphi %s262, %s262
                $region88: #{tpu_custom_call.1} parent=84 // loop_header_branch
                  %304 = sbr.rel (%p302) target = $region92
                $region89: #{tpu_custom_call.1} parent=84 // loop_body
                  %v308 = vld [vmem:[%s306] sm:$0xff]
                  %309 = vst [vmem:[%s307] sm:$0xff] %v308
                  %v310 = vld [vmem:[%s306 + $0x8] sm:$0xff]
                  %311 = vst [vmem:[%s307 + $0x8] sm:$0xff] %v310
                  %v312 = vld [vmem:[%s306 + $0x20] sm:$0xff]
                  %313 = vst [vmem:[%s307 + $0x10] sm:$0xff] %v312
                  %v314 = vld [vmem:[%s306 + $0x28] sm:$0xff]
                  %315 = vst [vmem:[%s307 + $0x18] sm:$0xff] %v314
                  %v316 = vld [vmem:[%s306 + $0x40] sm:$0xff]
                  %317 = vst [vmem:[%s307 + $0x20] sm:$0xff] %v316
                  %v318 = vld [vmem:[%s306 + $0x48] sm:$0xff]
                  %319 = vst [vmem:[%s307 + $0x28] sm:$0xff] %v318
                  %v320 = vld [vmem:[%s306 + $0x60] sm:$0xff]
                  %321 = vst [vmem:[%s307 + $0x30] sm:$0xff] %v320
                  %v322 = vld [vmem:[%s306 + $0x68] sm:$0xff]
                  %323 = vst [vmem:[%s307 + $0x38] sm:$0xff] %v322
                $region90: #{tpu_custom_call.1} parent=84 // loop_footer
                  %s305 = sadd.s32 1, %s301
                $region91: #{tpu_custom_call.1} parent=84 // loop_footer_branch
                  %300 = sbr.rel target = $region87
                $region92: #{tpu_custom_call.1} parent=84 // loop_exit
                  _
              $region85: #{tpu_custom_call.1} parent=69 // pred_fallthru
                _
              // Predicated region
              $region93: #{tpu_custom_call.1} parent=69 // pred_check
                _
              $region94: #{tpu_custom_call.1} parent=69 // pred_check_branch
                %325 = sbr.rel target = $region96
              $region95: #{tpu_custom_call.1} parent=69 // pred_region
                _
              $region96: #{tpu_custom_call.1} parent=69 // pred_fallthru
                _
            $region70: #{tpu_custom_call.1} parent=65 // pred_fallthru
              _
            // Predicated region
            $region71: #{tpu_custom_call.1} parent=65 // pred_check
              _
            $region72: #{tpu_custom_call.1} parent=65 // pred_check_branch
              %271 = sbr.rel target = $region74
            $region73: #{tpu_custom_call.1} parent=65 // pred_region
              %s273 = ssub.s32 256, 1
              loop: start=0, step=1, limit=1
              $region75: #{tpu_custom_call.1} parent=73 // loop_pre_header
                _
              $region76: #{tpu_custom_call.1} parent=73 // loop_header
                %s275 = sphi 0, %s279
                %p276 = scmp.ge.s32.totalorder %s275, 1
                %s280 = sphi %s265, %s265
                %s281 = sphi %s262, %s262
              $region77: #{tpu_custom_call.1} parent=73 // loop_header_branch
                %278 = sbr.rel (%p276) target = $region81
              $region78: #{tpu_custom_call.1} parent=73 // loop_body
                %v282 = vld [vmem:[%s280] sm:%s273]
                %283 = vst [vmem:[%s281] sm:%s273] %v282
                %v284 = vld [vmem:[%s280 + $0x8] sm:%s273]
                %285 = vst [vmem:[%s281 + $0x8] sm:%s273] %v284
                %v286 = vld [vmem:[%s280 + $0x20] sm:%s273]
                %287 = vst [vmem:[%s281 + $0x10] sm:%s273] %v286
                %v288 = vld [vmem:[%s280 + $0x28] sm:%s273]
                %289 = vst [vmem:[%s281 + $0x18] sm:%s273] %v288
                %v290 = vld [vmem:[%s280 + $0x40] sm:%s273]
                %291 = vst [vmem:[%s281 + $0x20] sm:%s273] %v290
                %v292 = vld [vmem:[%s280 + $0x48] sm:%s273]
                %293 = vst [vmem:[%s281 + $0x28] sm:%s273] %v292
                %v294 = vld [vmem:[%s280 + $0x60] sm:%s273]
                %295 = vst [vmem:[%s281 + $0x30] sm:%s273] %v294
                %v296 = vld [vmem:[%s280 + $0x68] sm:%s273]
                %297 = vst [vmem:[%s281 + $0x38] sm:%s273] %v296
              $region79: #{tpu_custom_call.1} parent=73 // loop_footer
                %s279 = sadd.s32 1, %s275
              $region80: #{tpu_custom_call.1} parent=73 // loop_footer_branch
                %274 = sbr.rel target = $region76
              $region81: #{tpu_custom_call.1} parent=73 // loop_exit
                _
            $region74: #{tpu_custom_call.1} parent=65 // pred_fallthru
              _
          $region66: #{tpu_custom_call.1} parent=61 // pred_fallthru
            _
          %326 = vnop
        $region62: #{tpu_custom_call.1} parent=15 // pred_fallthru
          _
      $region16: #{tpu_custom_call.1} parent=5 // pred_fallthru
        _
      %p327 = scmp.le.s32.totalorder 1, %s15
      %p328 = scmp.lt.s32.totalorder %s15, 3
      %p329 = pnand %p327, %p328
      %p330 = pneg %p329
      // Predicated region
      $region97: #{tpu_custom_call.1} parent=5 // pred_check
        _
      $region98: #{tpu_custom_call.1} parent=5 // pred_check_branch
        %332 = sbr.rel (%p329) target = $region100
      $region99: #{tpu_custom_call.1} parent=5 // pred_region
        %s333 = ssub.s32 %s15, 1
        %s334 = sand.u32 %s28, 1
        %s335 = scalar_lea.sflag [#allocation3], %s334
        %s336 = sand.u32 %s28, 1
        %s337 = smul.addr %s336, 256
        %s338 = scalar_lea.vmem [#allocation2], %s337
        // Predicated region
        $region101: #{tpu_custom_call.1} parent=99 // pred_check
          %p339 = pneg %p41
        $region102: #{tpu_custom_call.1} parent=99 // pred_check_branch
          %341 = sbr.rel (%p339) target = $region104
        $region103: #{tpu_custom_call.1} parent=99 // pred_region
          %342 = dma.done %s335, 4096
        $region104: #{tpu_custom_call.1} parent=99 // pred_fallthru
          _
        %s343 = sand.u32 %s54, 1
        %s344 = sand.u32 %s54, 1
        %s345 = smul.addr %s344, 64
        %s346 = scalar_lea.vmem [#allocation5], %s345
        // Predicated region
        $region105: #{tpu_custom_call.1} parent=99 // pred_check
          %p347 = pneg %p67
        $region106: #{tpu_custom_call.1} parent=99 // pred_check_branch
          %349 = sbr.rel (%p347) target = $region108
        $region107: #{tpu_custom_call.1} parent=99 // pred_region
          _
        $region108: #{tpu_custom_call.1} parent=99 // pred_fallthru
          _
        %s350 = sand.u32 %s80, 1
        %s351 = sand.u32 %s80, 1
        %s352 = smul.addr %s351, 64
        %s353 = scalar_lea.vmem [#allocation6], %s352
        // Predicated region
        $region109: #{tpu_custom_call.1} parent=99 // pred_check
          %p354 = pneg %p93
        $region110: #{tpu_custom_call.1} parent=99 // pred_check_branch
          %356 = sbr.rel (%p354) target = $region112
        $region111: #{tpu_custom_call.1} parent=99 // pred_region
          _
        $region112: #{tpu_custom_call.1} parent=99 // pred_fallthru
          _
        %s357 = sand.u32 %s28, 1
        %s358 = scalar_lea.sflag [#allocation3], %s357
        %s359 = sand.u32 %s28, 1
        %s360 = smul.addr %s359, 256
        %s361 = scalar_lea.vmem [#allocation2], %s360
        %p362 = pneg %p41
        %p363 = pneg %p38
        %s364 = sand.u32 %s54, 1
        %s365 = sand.u32 %s54, 1
        %s366 = smul.addr %s365, 64
        %s367 = scalar_lea.vmem [#allocation5], %s366
        %p368 = pneg %p67
        %p369 = pneg %p64
        %s370 = sand.u32 %s80, 1
        %s371 = sand.u32 %s80, 1
        %s372 = smul.addr %s371, 64
        %s373 = scalar_lea.vmem [#allocation6], %s372
        %p374 = pneg %p93
        %p375 = pneg %p90
        %p376 = pneg %p119
        %p377 = pneg %p116
        %s378 = sand.u32 %s106, 1
        %s379 = scalar_lea.sflag [#allocation4], %s378
        %s380 = sand.u32 %s106, 1
        %s381 = smul.addr %s380, 256
        %s382 = scalar_lea.vmem [#allocation7], %s381
        %s383 = smul.u32 2, %s20
        %s384 = smul.u32 2, %s20
        %s385 = smul.u32 2, %s20
        %s386 = smul.u32 2, %s20
        %v387 = vld [vmem:[%s338] sm:$0xff]
        %v388 = vld [vmem:[%s338 + $0x8] sm:$0xff]
        %v389 = vld [vmem:[%s338 + $0x10] sm:$0xff]
        %v390 = vld [vmem:[%s338 + $0x18] sm:$0xff]
        %v391 = vld [vmem:[%s338 + $0x20] sm:$0xff]
        %v392 = vld [vmem:[%s338 + $0x28] sm:$0xff]
        %v393 = vld [vmem:[%s338 + $0x30] sm:$0xff]
        %v394 = vld [vmem:[%s338 + $0x38] sm:$0xff]
        %v395 = vld [vmem:[%s338 + $0x40] sm:$0xff]
        %v396 = vld [vmem:[%s338 + $0x48] sm:$0xff]
        %v397 = vld [vmem:[%s338 + $0x50] sm:$0xff]
        %v398 = vld [vmem:[%s338 + $0x58] sm:$0xff]
        %v399 = vld [vmem:[%s338 + $0x60] sm:$0xff]
        %v400 = vld [vmem:[%s338 + $0x68] sm:$0xff]
        %v401 = vld [vmem:[%s338 + $0x70] sm:$0xff]
        %v402 = vld [vmem:[%s338 + $0x78] sm:$0xff]
        %v403 = vld [vmem:[%s338 + $0x80] sm:$0xff]
        %v404 = vld [vmem:[%s338 + $0x88] sm:$0xff]
        %v405 = vld [vmem:[%s338 + $0x90] sm:$0xff]
        %v406 = vld [vmem:[%s338 + $0x98] sm:$0xff]
        %v407 = vld [vmem:[%s338 + $0xa0] sm:$0xff]
        %v408 = vld [vmem:[%s338 + $0xa8] sm:$0xff]
        %v409 = vld [vmem:[%s338 + $0xb0] sm:$0xff]
        %v410 = vld [vmem:[%s338 + $0xb8] sm:$0xff]
        %v411 = vld [vmem:[%s338 + $0xc0] sm:$0xff]
        %v412 = vld [vmem:[%s338 + $0xc8] sm:$0xff]
        %v413 = vld [vmem:[%s338 + $0xd0] sm:$0xff]
        %v414 = vld [vmem:[%s338 + $0xd8] sm:$0xff]
        %v415 = vld [vmem:[%s338 + $0xe0] sm:$0xff]
        %v416 = vld [vmem:[%s338 + $0xe8] sm:$0xff]
        %v417 = vld [vmem:[%s338 + $0xf0] sm:$0xff]
        %v418 = vld [vmem:[%s338 + $0xf8] sm:$0xff]
        %v419 = vadd.f32 %v387, %v395
        %v420 = vadd.f32 %v419, %v403
        %v421 = vadd.f32 %v420, %v411
        %v422 = vadd.f32 %v388, %v396
        %v423 = vadd.f32 %v422, %v404
        %v424 = vadd.f32 %v423, %v412
        %v425 = vadd.f32 %v389, %v397
        %v426 = vadd.f32 %v425, %v405
        %v427 = vadd.f32 %v426, %v413
        %v428 = vadd.f32 %v390, %v398
        %v429 = vadd.f32 %v428, %v406
        %v430 = vadd.f32 %v429, %v414
        %v431 = vadd.f32 %v391, %v399
        %v432 = vadd.f32 %v431, %v407
        %v433 = vadd.f32 %v432, %v415
        %v434 = vadd.f32 %v392, %v400
        %v435 = vadd.f32 %v434, %v408
        %v436 = vadd.f32 %v435, %v416
        %v437 = vadd.f32 %v393, %v401
        %v438 = vadd.f32 %v437, %v409
        %v439 = vadd.f32 %v438, %v417
        %v440 = vadd.f32 %v394, %v402
        %v441 = vadd.f32 %v440, %v410
        %v442 = vadd.f32 %v441, %v418
        %v443 = vadd.f32 %v421, %v424
        %v444 = vadd.f32 %v443, %v427
        %v445 = vadd.f32 %v444, %v430
        %446 = vadd.xlane.f32.xlu0 %v445
        %v447 = vpop.xlane.xlu0 %446
        %v448 = vadd.f32 %v433, %v436
        %v449 = vadd.f32 %v448, %v439
        %v450 = vadd.f32 %v449, %v442
        %451 = vadd.xlane.f32.xlu0 %v450
        %v452 = vpop.xlane.xlu0 %451
        %v453 = vmul.f32 %v447, 0.00048828125
        %v454 = vmul.f32 %v452, 0.00048828125
        %v455 = vsub.f32 %v387, %v453
        %v456 = vsub.f32 %v388, %v453
        %v457 = vsub.f32 %v389, %v453
        %v458 = vsub.f32 %v390, %v453
        %v459 = vsub.f32 %v391, %v454
        %v460 = vsub.f32 %v392, %v454
        %v461 = vsub.f32 %v393, %v454
        %v462 = vsub.f32 %v394, %v454
        %v463 = vsub.f32 %v395, %v453
        %v464 = vsub.f32 %v396, %v453
        %v465 = vsub.f32 %v397, %v453
        %v466 = vsub.f32 %v398, %v453
        %v467 = vsub.f32 %v399, %v454
        %v468 = vsub.f32 %v400, %v454
        %v469 = vsub.f32 %v401, %v454
        %v470 = vsub.f32 %v402, %v454
        %v471 = vsub.f32 %v403, %v453
        %v472 = vsub.f32 %v404, %v453
        %v473 = vsub.f32 %v405, %v453
        %v474 = vsub.f32 %v406, %v453
        %v475 = vsub.f32 %v407, %v454
        %v476 = vsub.f32 %v408, %v454
        %v477 = vsub.f32 %v409, %v454
        %v478 = vsub.f32 %v410, %v454
        %v479 = vsub.f32 %v411, %v453
        %v480 = vsub.f32 %v412, %v453
        %v481 = vsub.f32 %v413, %v453
        %v482 = vsub.f32 %v414, %v453
        %v483 = vsub.f32 %v415, %v454
        %v484 = vsub.f32 %v416, %v454
        %v485 = vsub.f32 %v417, %v454
        %v486 = vsub.f32 %v418, %v454
        %v487 = vmul.f32 %v455, %v455
        %v488 = vmul.f32 %v456, %v456
        %v489 = vmul.f32 %v457, %v457
        %v490 = vmul.f32 %v458, %v458
        %v491 = vmul.f32 %v459, %v459
        %v492 = vmul.f32 %v460, %v460
        %v493 = vmul.f32 %v461, %v461
        %v494 = vmul.f32 %v462, %v462
        %v495 = vmul.f32 %v463, %v463
        %v496 = vmul.f32 %v464, %v464
        %v497 = vmul.f32 %v465, %v465
        %v498 = vmul.f32 %v466, %v466
        %v499 = vmul.f32 %v467, %v467
        %v500 = vmul.f32 %v468, %v468
        %v501 = vmul.f32 %v469, %v469
        %v502 = vmul.f32 %v470, %v470
        %v503 = vmul.f32 %v471, %v471
        %v504 = vmul.f32 %v472, %v472
        %v505 = vmul.f32 %v473, %v473
        %v506 = vmul.f32 %v474, %v474
        %v507 = vmul.f32 %v475, %v475
        %v508 = vmul.f32 %v476, %v476
        %v509 = vmul.f32 %v477, %v477
        %v510 = vmul.f32 %v478, %v478
        %v511 = vmul.f32 %v479, %v479
        %v512 = vmul.f32 %v480, %v480
        %v513 = vmul.f32 %v481, %v481
        %v514 = vmul.f32 %v482, %v482
        %v515 = vmul.f32 %v483, %v483
        %v516 = vmul.f32 %v484, %v484
        %v517 = vmul.f32 %v485, %v485
        %v518 = vmul.f32 %v486, %v486
        %v519 = vadd.f32 %v487, %v495
        %v520 = vadd.f32 %v519, %v503
        %v521 = vadd.f32 %v520, %v511
        %v522 = vadd.f32 %v488, %v496
        %v523 = vadd.f32 %v522, %v504
        %v524 = vadd.f32 %v523, %v512
        %v525 = vadd.f32 %v489, %v497
        %v526 = vadd.f32 %v525, %v505
        %v527 = vadd.f32 %v526, %v513
        %v528 = vadd.f32 %v490, %v498
        %v529 = vadd.f32 %v528, %v506
        %v530 = vadd.f32 %v529, %v514
        %v531 = vadd.f32 %v491, %v499
        %v532 = vadd.f32 %v531, %v507
        %v533 = vadd.f32 %v532, %v515
        %v534 = vadd.f32 %v492, %v500
        %v535 = vadd.f32 %v534, %v508
        %v536 = vadd.f32 %v535, %v516
        %v537 = vadd.f32 %v493, %v501
        %v538 = vadd.f32 %v537, %v509
        %v539 = vadd.f32 %v538, %v517
        %v540 = vadd.f32 %v494, %v502
        %v541 = vadd.f32 %v540, %v510
        %v542 = vadd.f32 %v541, %v518
        %v543 = vadd.f32 %v521, %v524
        %v544 = vadd.f32 %v543, %v527
        %v545 = vadd.f32 %v544, %v530
        %546 = vadd.xlane.f32.xlu0 %v545
        %v547 = vpop.xlane.xlu0 %546
        %v548 = vadd.f32 %v533, %v536
        %v549 = vadd.f32 %v548, %v539
        %v550 = vadd.f32 %v549, %v542
        %551 = vadd.xlane.f32.xlu0 %v550
        %v552 = vpop.xlane.xlu0 %551
        %v553 = vmul.f32 %v547, 0.00048828125
        %v554 = vmul.f32 %v552, 0.00048828125
        %v555 = vadd.f32 %v553, 1e-05
        %v556 = vadd.f32 %v554, 1e-05
        %v557 = vrsqrt.pop %v555
        %v558 = vrsqrt.pop %v556
        %v559 = vld [vmem:[%s346] sm:$0xff]
        %v560 = vld [vmem:[%s346 + $0x8] sm:$0xff]
        %v561 = vld [vmem:[%s346 + $0x10] sm:$0xff]
        %v562 = vld [vmem:[%s346 + $0x18] sm:$0xff]
        %v563 = vld [vmem:[%s346 + $0x20] sm:$0xff]
        %v564 = vld [vmem:[%s346 + $0x28] sm:$0xff]
        %v565 = vld [vmem:[%s346 + $0x30] sm:$0xff]
        %v566 = vld [vmem:[%s346 + $0x38] sm:$0xff]
        %v567 = vmul.f32 %v559, %v557
        %v568 = vmul.f32 %v560, %v558
        %v569 = vmul.f32 %v561, %v557
        %v570 = vmul.f32 %v562, %v558
        %v571 = vmul.f32 %v563, %v557
        %v572 = vmul.f32 %v564, %v558
        %v573 = vmul.f32 %v565, %v557
        %v574 = vmul.f32 %v566, %v558
        %576 = vset.pattern.permute.xlu0 0
        %577 = vperm.xlu0 %576, %v567
        %v578 = vpop.permute.xlu0 %577
        %581 = vset.pattern.permute.xlu0 0
        %582 = vperm.xlu0 %581, %v568
        %v583 = vpop.permute.xlu0 %582
        %586 = vset.pattern.permute.xlu0 0
        %587 = vperm.xlu0 %586, %v569
        %v588 = vpop.permute.xlu0 %587
        %591 = vset.pattern.permute.xlu0 0
        %592 = vperm.xlu0 %591, %v570
        %v593 = vpop.permute.xlu0 %592
        %596 = vset.pattern.permute.xlu0 0
        %597 = vperm.xlu0 %596, %v571
        %v598 = vpop.permute.xlu0 %597
        %601 = vset.pattern.permute.xlu0 0
        %602 = vperm.xlu0 %601, %v572
        %v603 = vpop.permute.xlu0 %602
        %606 = vset.pattern.permute.xlu0 0
        %607 = vperm.xlu0 %606, %v573
        %v608 = vpop.permute.xlu0 %607
        %611 = vset.pattern.permute.xlu0 0
        %612 = vperm.xlu0 %611, %v574
        %v613 = vpop.permute.xlu0 %612
        %v615 = vmul.f32 %v455, %v578
        %v616 = vmul.f32 %v456, %v578
        %v617 = vmul.f32 %v457, %v578
        %v618 = vmul.f32 %v458, %v578
        %v619 = vmul.f32 %v459, %v583
        %v620 = vmul.f32 %v460, %v583
        %v621 = vmul.f32 %v461, %v583
        %v622 = vmul.f32 %v462, %v583
        %v623 = vmul.f32 %v463, %v588
        %v624 = vmul.f32 %v464, %v588
        %v625 = vmul.f32 %v465, %v588
        %v626 = vmul.f32 %v466, %v588
        %v627 = vmul.f32 %v467, %v593
        %v628 = vmul.f32 %v468, %v593
        %v629 = vmul.f32 %v469, %v593
        %v630 = vmul.f32 %v470, %v593
        %v631 = vmul.f32 %v471, %v598
        %v632 = vmul.f32 %v472, %v598
        %v633 = vmul.f32 %v473, %v598
        %v634 = vmul.f32 %v474, %v598
        %v635 = vmul.f32 %v475, %v603
        %v636 = vmul.f32 %v476, %v603
        %v637 = vmul.f32 %v477, %v603
        %v638 = vmul.f32 %v478, %v603
        %v639 = vmul.f32 %v479, %v608
        %v640 = vmul.f32 %v480, %v608
        %v641 = vmul.f32 %v481, %v608
        %v642 = vmul.f32 %v482, %v608
        %v643 = vmul.f32 %v483, %v613
        %v644 = vmul.f32 %v484, %v613
        %v645 = vmul.f32 %v485, %v613
        %v646 = vmul.f32 %v486, %v613
        %v647 = vld [vmem:[%s353] sm:$0xff]
        %v648 = vld [vmem:[%s353 + $0x8] sm:$0xff]
        %v649 = vld [vmem:[%s353 + $0x10] sm:$0xff]
        %v650 = vld [vmem:[%s353 + $0x18] sm:$0xff]
        %v651 = vld [vmem:[%s353 + $0x20] sm:$0xff]
        %v652 = vld [vmem:[%s353 + $0x28] sm:$0xff]
        %v653 = vld [vmem:[%s353 + $0x30] sm:$0xff]
        %v654 = vld [vmem:[%s353 + $0x38] sm:$0xff]
        %656 = vset.pattern.permute.xlu0 0
        %657 = vperm.xlu0 %656, %v647
        %v658 = vpop.permute.xlu0 %657
        %661 = vset.pattern.permute.xlu0 0
        %662 = vperm.xlu0 %661, %v648
        %v663 = vpop.permute.xlu0 %662
        %666 = vset.pattern.permute.xlu0 0
        %667 = vperm.xlu0 %666, %v649
        %v668 = vpop.permute.xlu0 %667
        %671 = vset.pattern.permute.xlu0 0
        %672 = vperm.xlu0 %671, %v650
        %v673 = vpop.permute.xlu0 %672
        %676 = vset.pattern.permute.xlu0 0
        %677 = vperm.xlu0 %676, %v651
        %v678 = vpop.permute.xlu0 %677
        %681 = vset.pattern.permute.xlu0 0
        %682 = vperm.xlu0 %681, %v652
        %v683 = vpop.permute.xlu0 %682
        %686 = vset.pattern.permute.xlu0 0
        %687 = vperm.xlu0 %686, %v653
        %v688 = vpop.permute.xlu0 %687
        %691 = vset.pattern.permute.xlu0 0
        %692 = vperm.xlu0 %691, %v654
        %v693 = vpop.permute.xlu0 %692
        %v695 = vadd.f32 %v615, %v658
        %v696 = vadd.f32 %v616, %v658
        %v697 = vadd.f32 %v617, %v658
        %v698 = vadd.f32 %v618, %v658
        %v699 = vadd.f32 %v619, %v663
        %v700 = vadd.f32 %v620, %v663
        %v701 = vadd.f32 %v621, %v663
        %v702 = vadd.f32 %v622, %v663
        %v703 = vadd.f32 %v623, %v668
        %v704 = vadd.f32 %v624, %v668
        %v705 = vadd.f32 %v625, %v668
        %v706 = vadd.f32 %v626, %v668
        %v707 = vadd.f32 %v627, %v673
        %v708 = vadd.f32 %v628, %v673
        %v709 = vadd.f32 %v629, %v673
        %v710 = vadd.f32 %v630, %v673
        %v711 = vadd.f32 %v631, %v678
        %v712 = vadd.f32 %v632, %v678
        %v713 = vadd.f32 %v633, %v678
        %v714 = vadd.f32 %v634, %v678
        %v715 = vadd.f32 %v635, %v683
        %v716 = vadd.f32 %v636, %v683
        %v717 = vadd.f32 %v637, %v683
        %v718 = vadd.f32 %v638, %v683
        %v719 = vadd.f32 %v639, %v688
        %v720 = vadd.f32 %v640, %v688
        %v721 = vadd.f32 %v641, %v688
        %v722 = vadd.f32 %v642, %v688
        %v723 = vadd.f32 %v643, %v693
        %v724 = vadd.f32 %v644, %v693
        %v725 = vadd.f32 %v645, %v693
        %v726 = vadd.f32 %v646, %v693
        %727 = vst [vmem:[%s382] sm:$0xff] %v695
        %728 = vst [vmem:[%s382 + $0x8] sm:$0xff] %v696
        %729 = vst [vmem:[%s382 + $0x10] sm:$0xff] %v697
        %730 = vst [vmem:[%s382 + $0x18] sm:$0xff] %v698
        %731 = vst [vmem:[%s382 + $0x20] sm:$0xff] %v699
        %732 = vst [vmem:[%s382 + $0x28] sm:$0xff] %v700
        %733 = vst [vmem:[%s382 + $0x30] sm:$0xff] %v701
        %734 = vst [vmem:[%s382 + $0x38] sm:$0xff] %v702
        %735 = vst [vmem:[%s382 + $0x40] sm:$0xff] %v703
        %736 = vst [vmem:[%s382 + $0x48] sm:$0xff] %v704
        %737 = vst [vmem:[%s382 + $0x50] sm:$0xff] %v705
        %738 = vst [vmem:[%s382 + $0x58] sm:$0xff] %v706
        %739 = vst [vmem:[%s382 + $0x60] sm:$0xff] %v707
        %740 = vst [vmem:[%s382 + $0x68] sm:$0xff] %v708
        %741 = vst [vmem:[%s382 + $0x70] sm:$0xff] %v709
        %742 = vst [vmem:[%s382 + $0x78] sm:$0xff] %v710
        %743 = vst [vmem:[%s382 + $0x80] sm:$0xff] %v711
        %744 = vst [vmem:[%s382 + $0x88] sm:$0xff] %v712
        %745 = vst [vmem:[%s382 + $0x90] sm:$0xff] %v713
        %746 = vst [vmem:[%s382 + $0x98] sm:$0xff] %v714
        %747 = vst [vmem:[%s382 + $0xa0] sm:$0xff] %v715
        %748 = vst [vmem:[%s382 + $0xa8] sm:$0xff] %v716
        %749 = vst [vmem:[%s382 + $0xb0] sm:$0xff] %v717
        %750 = vst [vmem:[%s382 + $0xb8] sm:$0xff] %v718
        %751 = vst [vmem:[%s382 + $0xc0] sm:$0xff] %v719
        %752 = vst [vmem:[%s382 + $0xc8] sm:$0xff] %v720
        %753 = vst [vmem:[%s382 + $0xd0] sm:$0xff] %v721
        %754 = vst [vmem:[%s382 + $0xd8] sm:$0xff] %v722
        %755 = vst [vmem:[%s382 + $0xe0] sm:$0xff] %v723
        %756 = vst [vmem:[%s382 + $0xe8] sm:$0xff] %v724
        %757 = vst [vmem:[%s382 + $0xf0] sm:$0xff] %v725
        %758 = vst [vmem:[%s382 + $0xf8] sm:$0xff] %v726
        %s759 = sand.u32 %s106, 1
        %s760 = scalar_lea.sflag [#allocation4], %s759
        %s761 = sand.u32 %s106, 1
        %s762 = smul.addr %s761, 256
        %s763 = scalar_lea.vmem [#allocation7], %s762
        // Predicated region
        $region113: #{tpu_custom_call.1} parent=99 // pred_check
          %p764 = pneg %p116
        $region114: #{tpu_custom_call.1} parent=99 // pred_check_branch
          %766 = sbr.rel (%p764) target = $region116
        $region115: #{tpu_custom_call.1} parent=99 // pred_region
          #allocation11 [shape = 'u32[6]{0}', space=smem, size = 0x18, scoped, tag = 'DMA stride descriptor']
          %s767 = smul.u32 2, %s20
          %s769 = ssub.s32 4096, 4096
          %770 = vsyncadd %s760, %s769
          %s771 = smul.addr %s767, 4
          %s772 = smul.addr %s771, 128
          %s773 = scalar_lea.hbm %s3, %s772
          %s775 = sshll.u32 1, 14
          %s776 = sxor.u32 4294967295, %s775
          %s779 = sshll.u32 7, 18
          %s780 = sxor.u32 4294967295, %s779
          %s781 = sand.u32 0, %s780
          %s783 = sor.u32 %s781, 0
          %s784 = sshll.u32 %s763, 4
          %s785 = int_to_ptr.vmem [resolvable:$true] %s784
          %791 = sst [smem:[#allocation11]] 1024
          %s792 = scalar_lea.smem [#allocation11], 1
          %793 = sst [smem:[%s792]] 2048
          %s794 = scalar_lea.smem [#allocation11], 2
          %795 = sst [smem:[%s794]] 2
          %s796 = scalar_lea.smem [#allocation11], 3
          %797 = sst [smem:[%s796]] 512
          %s798 = scalar_lea.smem [#allocation11], 4
          %799 = sst [smem:[%s798]] 512
          %s800 = scalar_lea.smem [#allocation11], 5
          %801 = sst [smem:[%s800]] 32
          %803 = dma.general %s785, 4096, %s773, %s760, 131072, [#allocation11], %s783, 0
        $region116: #{tpu_custom_call.1} parent=99 // pred_fallthru
          _
      $region100: #{tpu_custom_call.1} parent=5 // pred_fallthru
        _
      %p804 = scmp.le.s32.totalorder 2, %s15
      // Predicated region
      $region117: #{tpu_custom_call.1} parent=5 // pred_check
        %p805 = pneg %p804
      $region118: #{tpu_custom_call.1} parent=5 // pred_check_branch
        %807 = sbr.rel (%p805) target = $region120
      $region119: #{tpu_custom_call.1} parent=5 // pred_region
        %s808 = ssub.s32 %s15, 2
        // Predicated region
        $region121: #{tpu_custom_call.1} parent=119 // pred_check
          %p809 = pneg %p122
        $region122: #{tpu_custom_call.1} parent=119 // pred_check_branch
          %811 = sbr.rel (%p809) target = $region124
        $region123: #{tpu_custom_call.1} parent=119 // pred_region
          %s812 = sand.u32 %s107, 1
          %s813 = scalar_lea.sflag [#allocation4], %s812
          %s814 = sand.u32 %s107, 1
          %s815 = smul.addr %s814, 256
          %s816 = scalar_lea.vmem [#allocation7], %s815
          %817 = dma.done %s813, 4096
        $region124: #{tpu_custom_call.1} parent=119 // pred_fallthru
          _
      $region120: #{tpu_custom_call.1} parent=5 // pred_fallthru
        _
    $region6: #{tpu_custom_call.1} parent=1 // loop_footer
      %s19 = sadd.s32 1, %s15
    $region7: #{tpu_custom_call.1} parent=1 // loop_footer_branch
      %14 = sbr.rel target = $region3
    $region8: #{tpu_custom_call.1} parent=1 // loop_exit
      _
    %818 = vsyncpa [#allocation3], 1
    %s819 = scalar_lea.sflag [#allocation3], 1
    %820 = vsyncpa %s819, 1
    %821 = vsyncpa [#allocation4], 1
    %s822 = scalar_lea.sflag [#allocation4], 1
    %823 = vsyncpa %s822, 1

</llo_original>
